<compile_context>
chip_gen: v7x
topology: tpu7x:2x2x1
jax: 0.10.0
libtpu: 0.0.40
codegen_flags: <defaults>
</compile_context>

<pallas_src>
import functools

import jax
import jax.numpy as jnp
from jax.experimental import pallas as pl
from jax.experimental.pallas import tpu as pltpu

_LANE = 128
_EPS = 1e-5


def _make_mlp_kernel(n_layers: int, activations: tuple, d_ins: tuple, out_dim: int):
    """Kernel body. refs = (x, w0, b0, w1, b1, ..., w_{n-1}, b_{n-1}, out)."""

    def kernel(*refs):
        x_ref = refs[0]
        o_ref = refs[-1]
        x = x_ref[...]                                    # (B, d_in0) f32, unpadded
        for i in range(n_layers):                         # static unroll
            w = refs[1 + 2 * i][...]                      # (d_in_i, 128) f32, pre-transposed
            b = refs[2 + 2 * i][...]                      # (1, 128)      f32
            d_in = d_ins[i]
            # Static lane slice of the resident activation down to the true
            # contraction width (no-op for the first layer).
            xin = x if x.shape[1] == d_in else x[:, :d_in]
            # Linear: x @ W^T + b  (MXU, f32 accumulate).
            y = jnp.dot(xin, w, preferred_element_type=jnp.float32) + b

            if i != n_layers - 1:
                # BatchNorm1d(affine=False, track_running_stats=False):
                # batch statistics, biased variance, eps = 1e-5.
                # Centered form (no cancellation risk); reuse (y - mean).
                mean = jnp.mean(y, axis=0, keepdims=True)
                centered = y - mean
                var = jnp.mean(centered * centered, axis=0, keepdims=True)
                y = centered * jax.lax.rsqrt(var + _EPS)

            act = activations[i]
            if act == "relu":
                y = jnp.maximum(y, 0.0)
            elif act == "sigmoid":
                # 1 / (1 + exp(-y)): exp and the approximate reciprocal both
                # go to the otherwise-idle EUP slot.
                y = pl.reciprocal(1.0 + jnp.exp(-y), approx=True)
            # anything else: identity passthrough
            x = y
        # Final masked store of the true output lanes (out_shape is (B, out_dim)).
        out = x if x.shape[1] == out_dim else x[:, :out_dim]
        o_ref[...] = out.astype(o_ref.dtype)

    return kernel


def prepare_params(params, lane_pad=_LANE):
    """One-time parameter prep (outside the hot path): transpose PyTorch
    (Dout, Din) weights to (Din, Dout) and pad ONLY the lane (Dout) dim to 128.
    The contraction (Din) dim keeps its true size -> minimal weight DMA."""
    prepped = []
    for w, b in params:
        d_out, d_in = w.shape
        w_p = jnp.zeros((d_in, lane_pad), jnp.float32)
        w_p = w_p.at[:, :d_out].set(jnp.transpose(w).astype(jnp.float32))
        b_p = jnp.zeros((1, lane_pad), jnp.float32)
        b_p = b_p.at[:, :d_out].set(b.astype(jnp.float32))
        prepped.append((w_p, b_p))
    return prepped


@functools.partial(jax.jit, static_argnames=("activations", "out_dim"))
def mlp_forward(x, prepped_params, *, activations, out_dim):
    """Single fused pallas_call for the whole MLP (mirrors SolutionModel.forward).
    No wrapper-side pad/slice: unpadded x in, (B, out_dim) out."""
    B = x.shape[0]
    n_layers = len(prepped_params)
    d_ins = tuple(w.shape[0] for w, _ in prepped_params)
    lane_pad = prepped_params[0][0].shape[1]

    flat = []
    for w, b in prepped_params:
        flat.append(w)
        flat.append(b)

    # Advisory cost hint: the custom call is tiny; let XLA schedule tightly.
    flops = 2 * B * lane_pad * sum(d_ins)
    weight_bytes = sum(w.size * 4 + b.size * 4 for w, b in prepped_params)
    bytes_accessed = weight_bytes + x.size * 4 + B * out_dim * 4
    transcendentals = 2 * B * lane_pad
    cost = pl.CostEstimate(
        flops=flops, transcendentals=transcendentals, bytes_accessed=bytes_accessed
    )

    kernel = _make_mlp_kernel(n_layers, tuple(activations), d_ins, out_dim)
    vmem = pl.BlockSpec(memory_space=pltpu.MemorySpace.VMEM)
    out = pl.pallas_call(
        kernel,
        out_shape=jax.ShapeDtypeStruct((B, out_dim), jnp.float32),
        in_specs=[vmem] * (1 + 2 * n_layers),
        out_specs=vmem,
        cost_estimate=cost,
    )(x.astype(jnp.float32), *flat)
    return out


def init_params(key, sizes):
    """Deterministic PyTorch-like uniform fan-in init of Linear weights/biases."""
    params = []
    for d_in, d_out in zip(sizes[:-1], sizes[1:]):
        key, kw, kb = jax.random.split(key, 3)
        bound = 1.0 / jnp.sqrt(jnp.float32(d_in))
        w = jax.random.uniform(kw, (d_out, d_in), jnp.float32, -bound, bound)
        b = jax.random.uniform(kb, (d_out,), jnp.float32, -bound, bound)
        params.append((w, b))
    return params


if __name__ == "__main__":
    # MLP consistent with the module: input_size=8, hidden_sizes=[32, 32],
    # output_size=4, batch=8; relu on hidden layers, sigmoid on output.
    input_size = 8
    hidden_sizes = [32, 32]
    output_size = 4
    batch = 8
    sizes = [input_size] + hidden_sizes + [output_size]
    activations = ("relu",) * len(hidden_sizes) + ("sigmoid",)

    key = jax.random.PRNGKey(0)
    key, kx = jax.random.split(key)
    x = jax.random.normal(kx, (batch, input_size), jnp.float32)
    params = init_params(key, sizes)

    prepped = prepare_params(params)    # one-time: transpose + 128-lane (Dout) pad

    out = mlp_forward(x, prepped, activations=activations, out_dim=output_size)
    out = jax.block_until_ready(out)

    # Pure-JAX reference of the same math (exact sigmoid division).
    def ref_forward(x, params, activations):
        n = len(params)
        for idx, ((w, b), act) in enumerate(zip(params, activations)):
            x = x @ w.T + b
            if idx != n - 1:
                m = jnp.mean(x, axis=0, keepdims=True)
                v = jnp.mean((x - m) ** 2, axis=0, keepdims=True)
                x = (x - m) / jnp.sqrt(v + _EPS)
            x = jnp.maximum(x, 0.0) if act == "relu" else jax.nn.sigmoid(x)
        return x

    ref = ref_forward(x, params, activations)
    assert out.shape == (batch, output_size)
    # Tolerance accounts for the EUP approximate reciprocal in the sigmoid.
    assert jnp.allclose(out, ref, atol=2e-3, rtol=2e-3), float(
        jnp.max(jnp.abs(out - ref))
    )
    print("KERNEL_OK")
</pallas_src>

<mosaic_0001>
module attributes {stable_mosaic.version = 11 : i64} {
  func.func @kernel(%arg0: memref<8x8xf32, #tpu.memory_space<vmem>>, %arg1: memref<8x128xf32, #tpu.memory_space<vmem>>, %arg2: memref<1x128xf32, #tpu.memory_space<vmem>>, %arg3: memref<32x128xf32, #tpu.memory_space<vmem>>, %arg4: memref<1x128xf32, #tpu.memory_space<vmem>>, %arg5: memref<32x128xf32, #tpu.memory_space<vmem>>, %arg6: memref<1x128xf32, #tpu.memory_space<vmem>>, %arg7: memref<8x4xf32, #tpu.memory_space<vmem>>) attributes {dimension_semantics = [], scalar_prefetch = 0 : i64, scratch_operands = 0 : i64, tpu.core_type = #tpu.core_type<tc>} {
    %c0 = arith.constant 0 : index
    %c0_0 = arith.constant 0 : index
    %0 = vector.load %arg0[%c0, %c0_0] : memref<8x8xf32, #tpu.memory_space<vmem>>, vector<8x8xf32>
    %c0_1 = arith.constant 0 : index
    %c0_2 = arith.constant 0 : index
    %1 = vector.load %arg1[%c0_1, %c0_2] : memref<8x128xf32, #tpu.memory_space<vmem>>, vector<8x128xf32>
    %c0_3 = arith.constant 0 : index
    %c0_4 = arith.constant 0 : index
    %2 = vector.load %arg2[%c0_3, %c0_4] : memref<1x128xf32, #tpu.memory_space<vmem>>, vector<1x128xf32>
    %cst = arith.constant dense<0.000000e+00> : vector<8x128xf32>
    %3 = tpu.matmul %0, %1, %cst {dimension_numbers = #tpu.dot_dimension_numbers<[1], [0], [0], [1], [0, 0, 1, 1], [], []>} : vector<8x8xf32>, vector<8x128xf32>, vector<8x128xf32> -> vector<8x128xf32>
    %4 = vector.broadcast %2 : vector<1x128xf32> to vector<8x128xf32>
    %5 = arith.addf %3, %4 : vector<8x128xf32>
    %cst_5 = arith.constant dense<0.000000e+00> : vector<128xf32>
    %6 = vector.multi_reduction <add>, %5, %cst_5 [0] : vector<8x128xf32> to vector<128xf32>
    %7 = vector.shape_cast %6 : vector<128xf32> to vector<1x128xf32>
    %cst_6 = arith.constant 8.000000e+00 : f32
    %8 = vector.broadcast %cst_6 : f32 to vector<1x128xf32>
    %9 = arith.divf %7, %8 : vector<1x128xf32>
    %10 = vector.broadcast %9 : vector<1x128xf32> to vector<8x128xf32>
    %11 = arith.subf %5, %10 : vector<8x128xf32>
    %12 = arith.mulf %11, %11 : vector<8x128xf32>
    %cst_7 = arith.constant dense<0.000000e+00> : vector<128xf32>
    %13 = vector.multi_reduction <add>, %12, %cst_7 [0] : vector<8x128xf32> to vector<128xf32>
    %14 = vector.shape_cast %13 : vector<128xf32> to vector<1x128xf32>
    %cst_8 = arith.constant 8.000000e+00 : f32
    %15 = vector.broadcast %cst_8 : f32 to vector<1x128xf32>
    %16 = arith.divf %14, %15 : vector<1x128xf32>
    %cst_9 = arith.constant 9.99999974E-6 : f32
    %17 = vector.broadcast %cst_9 : f32 to vector<1x128xf32>
    %18 = arith.addf %16, %17 : vector<1x128xf32>
    %19 = math.rsqrt %18 : vector<1x128xf32>
    %20 = vector.broadcast %19 : vector<1x128xf32> to vector<8x128xf32>
    %21 = arith.mulf %11, %20 : vector<8x128xf32>
    %cst_10 = arith.constant 0.000000e+00 : f32
    %22 = vector.broadcast %cst_10 : f32 to vector<8x128xf32>
    %23 = arith.maximumf %21, %22 : vector<8x128xf32>
    %c0_11 = arith.constant 0 : index
    %c0_12 = arith.constant 0 : index
    %24 = vector.load %arg3[%c0_11, %c0_12] : memref<32x128xf32, #tpu.memory_space<vmem>>, vector<32x128xf32>
    %c0_13 = arith.constant 0 : index
    %c0_14 = arith.constant 0 : index
    %25 = vector.load %arg4[%c0_13, %c0_14] : memref<1x128xf32, #tpu.memory_space<vmem>>, vector<1x128xf32>
    %26 = vector.extract_strided_slice %23 {offsets = [0, 0], sizes = [8, 32], strides = [1, 1]} : vector<8x128xf32> to vector<8x32xf32>
    %cst_15 = arith.constant dense<0.000000e+00> : vector<8x128xf32>
    %27 = tpu.matmul %26, %24, %cst_15 {dimension_numbers = #tpu.dot_dimension_numbers<[1], [0], [0], [1], [0, 0, 1, 1], [], []>} : vector<8x32xf32>, vector<32x128xf32>, vector<8x128xf32> -> vector<8x128xf32>
    %28 = vector.broadcast %25 : vector<1x128xf32> to vector<8x128xf32>
    %29 = arith.addf %27, %28 : vector<8x128xf32>
    %cst_16 = arith.constant dense<0.000000e+00> : vector<128xf32>
    %30 = vector.multi_reduction <add>, %29, %cst_16 [0] : vector<8x128xf32> to vector<128xf32>
    %31 = vector.shape_cast %30 : vector<128xf32> to vector<1x128xf32>
    %cst_17 = arith.constant 8.000000e+00 : f32
    %32 = vector.broadcast %cst_17 : f32 to vector<1x128xf32>
    %33 = arith.divf %31, %32 : vector<1x128xf32>
    %34 = vector.broadcast %33 : vector<1x128xf32> to vector<8x128xf32>
    %35 = arith.subf %29, %34 : vector<8x128xf32>
    %36 = arith.mulf %35, %35 : vector<8x128xf32>
    %cst_18 = arith.constant dense<0.000000e+00> : vector<128xf32>
    %37 = vector.multi_reduction <add>, %36, %cst_18 [0] : vector<8x128xf32> to vector<128xf32>
    %38 = vector.shape_cast %37 : vector<128xf32> to vector<1x128xf32>
    %cst_19 = arith.constant 8.000000e+00 : f32
    %39 = vector.broadcast %cst_19 : f32 to vector<1x128xf32>
    %40 = arith.divf %38, %39 : vector<1x128xf32>
    %cst_20 = arith.constant 9.99999974E-6 : f32
    %41 = vector.broadcast %cst_20 : f32 to vector<1x128xf32>
    %42 = arith.addf %40, %41 : vector<1x128xf32>
    %43 = math.rsqrt %42 : vector<1x128xf32>
    %44 = vector.broadcast %43 : vector<1x128xf32> to vector<8x128xf32>
    %45 = arith.mulf %35, %44 : vector<8x128xf32>
    %cst_21 = arith.constant 0.000000e+00 : f32
    %46 = vector.broadcast %cst_21 : f32 to vector<8x128xf32>
    %47 = arith.maximumf %45, %46 : vector<8x128xf32>
    %c0_22 = arith.constant 0 : index
    %c0_23 = arith.constant 0 : index
    %48 = vector.load %arg5[%c0_22, %c0_23] : memref<32x128xf32, #tpu.memory_space<vmem>>, vector<32x128xf32>
    %c0_24 = arith.constant 0 : index
    %c0_25 = arith.constant 0 : index
    %49 = vector.load %arg6[%c0_24, %c0_25] : memref<1x128xf32, #tpu.memory_space<vmem>>, vector<1x128xf32>
    %50 = vector.extract_strided_slice %47 {offsets = [0, 0], sizes = [8, 32], strides = [1, 1]} : vector<8x128xf32> to vector<8x32xf32>
    %cst_26 = arith.constant dense<0.000000e+00> : vector<8x128xf32>
    %51 = tpu.matmul %50, %48, %cst_26 {dimension_numbers = #tpu.dot_dimension_numbers<[1], [0], [0], [1], [0, 0, 1, 1], [], []>} : vector<8x32xf32>, vector<32x128xf32>, vector<8x128xf32> -> vector<8x128xf32>
    %52 = vector.broadcast %49 : vector<1x128xf32> to vector<8x128xf32>
    %53 = arith.addf %51, %52 : vector<8x128xf32>
    %cst_27 = arith.constant 0.000000e+00 : f32
    %54 = vector.broadcast %cst_27 : f32 to vector<8x128xf32>
    %55 = arith.subf %54, %53 : vector<8x128xf32>
    %56 = math.exp %55 : vector<8x128xf32>
    %cst_28 = arith.constant 1.000000e+00 : f32
    %57 = vector.broadcast %cst_28 : f32 to vector<8x128xf32>
    %58 = arith.addf %57, %56 : vector<8x128xf32>
    %59 = tpu.reciprocal %58 {approx = true} : vector<8x128xf32> -> vector<8x128xf32>
    %60 = vector.extract_strided_slice %59 {offsets = [0, 0], sizes = [8, 4], strides = [1, 1]} : vector<8x128xf32> to vector<8x4xf32>
    %c0_29 = arith.constant 0 : index
    %c0_30 = arith.constant 0 : index
    %61 = vector.load %arg7[%c0_29, %c0_30] : memref<8x4xf32, #tpu.memory_space<vmem>>, vector<8x4xf32>
    tpu.vector_store %arg7[%c0_29, %c0_30], %60 {strides = array<i32>} : memref<8x4xf32, #tpu.memory_space<vmem>>, vector<8x4xf32>,
    return
  }
}

</mosaic_0001>

<llo_original>
// kernel: mlp_forward.1
$region0: #{mlp_forward.1}
  #allocation0 [shape = 'u32[]', space=smem, size = 0x4, offset = 0x4, fixed_abs, tag = 'smem constant byte address 0x4 - core index']
  #allocation1 [shape = 'u32[144,128]{1,0:T(1,128)}', space=vmem, size = 0x12000, scoped, tag = 'internal scratch']
  %s0 = inlined_call_operand.hbm [shape: f32[8,8], index: 0, kind: input, shape index: {}]
  %s1 = inlined_call_operand.hbm [shape: f32[8,128], index: 1, kind: input, shape index: {}]
  %s2 = inlined_call_operand.vmem [shape: f32[1,128], index: 2, kind: input, shape index: {}]
  %s3 = inlined_call_operand.hbm [shape: f32[32,128], index: 3, kind: input, shape index: {}]
  %s4 = inlined_call_operand.vmem [shape: f32[1,128], index: 4, kind: input, shape index: {}]
  %s5 = inlined_call_operand.hbm [shape: f32[32,128], index: 5, kind: input, shape index: {}]
  %s6 = inlined_call_operand.vmem [shape: f32[1,128], index: 6, kind: input, shape index: {}]
  %s7 = inlined_call_operand.vmem [shape: f32[8,4], index: 7, kind: output, shape index: {}]
  %s8 = sld [smem:[#allocation0]]
  $region54: #{mlp_forward.1} parent=0
    _
  %s10 = ssub.s32 1, %s8
  %s11 = scalar_select 0, %s10, %s8
  $region1: #{mlp_forward.1} parent=0
    #allocation2 [shape = 'u8[4096]{0}', space=vmem, size = 0x1000, scoped, tag = 'input window, operand 0, single buffered']
    #allocation3 [shape = 's32[1]{0}', space=sflag, size = 0x4, scoped, tag = 'scoped memory for mlp_forward.1']
    #allocation4 [shape = 'u8[4096]{0}', space=vmem, size = 0x1000, scoped, tag = 'input window, operand 1, single buffered']
    #allocation5 [shape = 's32[1]{0}', space=sflag, size = 0x4, scoped, tag = 'scoped memory for mlp_forward.1']
    #allocation6 [shape = 'u8[16384]{0}', space=vmem, size = 0x4000, scoped, tag = 'input window, operand 3, single buffered']
    #allocation7 [shape = 'u8[16384]{0}', space=vmem, size = 0x4000, scoped, tag = 'input window, operand 5, single buffered']
    #allocation8 [shape = 's32[1]{0}', space=sflag, size = 0x4, scoped, tag = 'scoped memory for mlp_forward.1']
    %12 = vsyncpa [#allocation3], 0
    %13 = vsyncpa [#allocation5], 0
    %14 = vsyncpa [#allocation8], 0
    // Predicated region
    $region2: #{mlp_forward.1} parent=1 // pred_check
      _
    $region3: #{mlp_forward.1} parent=1 // pred_check_branch
      %16 = sbr.rel (0) target = $region5
    $region4: #{mlp_forward.1} parent=1 // pred_region
      %s18 = ssub.s32 128, 128
      %19 = vsyncadd [#allocation3], %s18
      %s21 = sshll.u32 [#allocation2], 4
      %s22 = int_to_ptr.vmem [resolvable:$true] %s21
      %24 = dma.hbm_to_vmem [thread:$0]  %s0, 128, %s22, [#allocation3]
    $region5: #{mlp_forward.1} parent=1 // pred_fallthru
      _
    // Predicated region
    $region6: #{mlp_forward.1} parent=1 // pred_check
      _
    $region7: #{mlp_forward.1} parent=1 // pred_check_branch
      %26 = sbr.rel (0) target = $region9
    $region8: #{mlp_forward.1} parent=1 // pred_region
      %s28 = ssub.s32 128, 128
      %29 = vsyncadd [#allocation5], %s28
      %s31 = sshll.u32 [#allocation4], 4
      %s32 = int_to_ptr.vmem [resolvable:$true] %s31
      %34 = dma.hbm_to_vmem [thread:$0]  %s1, 128, %s32, [#allocation5]
    $region9: #{mlp_forward.1} parent=1 // pred_fallthru
      _
    // Predicated region
    $region10: #{mlp_forward.1} parent=1 // pred_check
      _
    $region11: #{mlp_forward.1} parent=1 // pred_check_branch
      %36 = sbr.rel (0) target = $region13
    $region12: #{mlp_forward.1} parent=1 // pred_region
      _
    $region13: #{mlp_forward.1} parent=1 // pred_fallthru
      _
    // Predicated region
    $region14: #{mlp_forward.1} parent=1 // pred_check
      _
    $region15: #{mlp_forward.1} parent=1 // pred_check_branch
      %38 = sbr.rel (0) target = $region17
    $region16: #{mlp_forward.1} parent=1 // pred_region
      %s40 = ssub.s32 512, 512
      %41 = vsyncadd [#allocation5], %s40
      %s42 = sshll.u32 [#allocation6], 4
      %s43 = int_to_ptr.vmem [resolvable:$true] %s42
      %48 = dma.hbm_to_vmem [thread:$0]  %s3, 512, %s43, [#allocation5], 128, 128, 8
    $region17: #{mlp_forward.1} parent=1 // pred_fallthru
      _
    // Predicated region
    $region18: #{mlp_forward.1} parent=1 // pred_check
      _
    $region19: #{mlp_forward.1} parent=1 // pred_check_branch
      %50 = sbr.rel (0) target = $region21
    $region20: #{mlp_forward.1} parent=1 // pred_region
      _
    $region21: #{mlp_forward.1} parent=1 // pred_fallthru
      _
    // Predicated region
    $region22: #{mlp_forward.1} parent=1 // pred_check
      _
    $region23: #{mlp_forward.1} parent=1 // pred_check_branch
      %52 = sbr.rel (0) target = $region25
    $region24: #{mlp_forward.1} parent=1 // pred_region
      %s54 = ssub.s32 512, 512
      %55 = vsyncadd [#allocation8], %s54
      %s56 = sshll.u32 [#allocation7], 4
      %s57 = int_to_ptr.vmem [resolvable:$true] %s56
      %62 = dma.hbm_to_vmem [thread:$0]  %s5, 512, %s57, [#allocation8], 128, 128, 8
    $region25: #{mlp_forward.1} parent=1 // pred_fallthru
      _
    // Predicated region
    $region26: #{mlp_forward.1} parent=1 // pred_check
      _
    $region27: #{mlp_forward.1} parent=1 // pred_check_branch
      %64 = sbr.rel (0) target = $region29
    $region28: #{mlp_forward.1} parent=1 // pred_region
      _
    $region29: #{mlp_forward.1} parent=1 // pred_fallthru
      _
    // Predicated region
    $region30: #{mlp_forward.1} parent=1 // pred_check
      _
    $region31: #{mlp_forward.1} parent=1 // pred_check_branch
      %66 = sbr.rel (0) target = $region33
    $region32: #{mlp_forward.1} parent=1 // pred_region
      %67 = dma.done [#allocation3], 128
    $region33: #{mlp_forward.1} parent=1 // pred_fallthru
      _
    // Predicated region
    $region34: #{mlp_forward.1} parent=1 // pred_check
      _
    $region35: #{mlp_forward.1} parent=1 // pred_check_branch
      %69 = sbr.rel (0) target = $region37
    $region36: #{mlp_forward.1} parent=1 // pred_region
      %70 = dma.done [#allocation5], 128
    $region37: #{mlp_forward.1} parent=1 // pred_fallthru
      _
    // Predicated region
    $region38: #{mlp_forward.1} parent=1 // pred_check
      _
    $region39: #{mlp_forward.1} parent=1 // pred_check_branch
      %72 = sbr.rel (0) target = $region41
    $region40: #{mlp_forward.1} parent=1 // pred_region
      %73 = dma.done [#allocation5], 512
    $region41: #{mlp_forward.1} parent=1 // pred_fallthru
      _
    // Predicated region
    $region42: #{mlp_forward.1} parent=1 // pred_check
      _
    $region43: #{mlp_forward.1} parent=1 // pred_check_branch
      %75 = sbr.rel (0) target = $region45
    $region44: #{mlp_forward.1} parent=1 // pred_region
      %76 = dma.done [#allocation8], 512
    $region45: #{mlp_forward.1} parent=1 // pred_fallthru
      _
    %v77 = vld [vmem:[#allocation2] sm:$0xff]
    %v78 = vld [vmem:[#allocation4] sm:$0xff]
    %v79 = vld [vmem:[%s2] sm:$0x1]
    %v81 = vlaneseq
    %v82 = vshrl.u32 %v81, 7
    %v83 = vsub.s32 0, %v82
    %v84 = vrot.slane %v79, %v83
    %vm86 = vcmask 64512
    %v88 = vsel %vm86, %v77, 0
    %90 = vmatprep.subr.mxu0 0.0
    %91 = vmatpush1.msra.mxu0 %v78
    %92 = vmatprep.subr.mxu0 0.0
    %93 = vmatpush1.msra.mxu0 0.0
    %94 = vmatprep.subr.mxu0 0.0
    %95 = vmatpush1.msra.mxu0 0.0
    %96 = vmatprep.subr.mxu0 0.0
    %97 = vmatpush1.msra.mxu0 0.0
    %98 = vmatprep.subr.mxu0 0.0
    %99 = vmatpush1.msra.mxu0 0.0
    %100 = vmatprep.subr.mxu0 0.0
    %101 = vmatpush1.msra.mxu0 0.0
    %102 = vmatprep.subr.mxu0 0.0
    %103 = vmatpush1.msra.mxu0 0.0
    %104 = vmatprep.subr.mxu0 0.0
    %105 = vmatpush1.msra.mxu0 0.0
    %106 = vmatprep.subr.mxu0 0.0
    %107 = vmatpush1.msra.mxu0 0.0
    %108 = vmatprep.subr.mxu0 0.0
    %109 = vmatpush1.msra.mxu0 0.0
    %110 = vmatprep.subr.mxu0 0.0
    %111 = vmatpush1.msra.mxu0 0.0
    %112 = vmatprep.subr.mxu0 0.0
    %113 = vmatpush1.msra.mxu0 0.0
    %114 = vmatprep.subr.mxu0 0.0
    %115 = vmatpush1.msra.mxu0 0.0
    %116 = vmatprep.subr.mxu0 0.0
    %117 = vmatpush1.msra.mxu0 0.0
    %118 = vmatprep.subr.mxu0 0.0
    %119 = vmatpush1.msra.mxu0 0.0
    %120 = vmatprep.subr.mxu0 0.0
    %121 = vmatpush1.msra.mxu0 0.0
    %122 = vmatprep.subr.mxu0 0.0
    %123 = vmatpush1.msra.mxu0 0.0
    %124 = vmatprep.subr.mxu0 0.0
    %125 = vmatpush1.msra.mxu0 0.0
    %126 = vmatprep.subr.mxu0 0.0
    %127 = vmatpush1.msra.mxu0 0.0
    %128 = vmatprep.subr.mxu0 0.0
    %129 = vmatpush1.msra.mxu0 0.0
    %130 = vmatprep.subr.mxu0 0.0
    %131 = vmatpush1.msra.mxu0 0.0
    %132 = vmatprep.subr.mxu0 0.0
    %133 = vmatpush1.msra.mxu0 0.0
    %134 = vmatprep.subr.mxu0 0.0
    %135 = vmatpush1.msra.mxu0 0.0
    %136 = vmatprep.subr.mxu0 0.0
    %137 = vmatpush1.msra.mxu0 0.0
    %138 = vmatprep.subr.mxu0 0.0
    %139 = vmatpush1.msra.mxu0 0.0
    %140 = vmatprep.subr.mxu0 0.0
    %141 = vmatpush1.msra.mxu0 0.0
    %142 = vmatprep.subr.mxu0 0.0
    %143 = vmatpush1.msra.mxu0 0.0
    %144 = vmatprep.subr.mxu0 0.0
    %145 = vmatpush1.msra.mxu0 0.0
    %146 = vmatprep.subr.mxu0 0.0
    %147 = vmatpush1.msra.mxu0 0.0
    %148 = vmatprep.subr.mxu0 0.0
    %149 = vmatpush1.msra.mxu0 0.0
    %150 = vmatprep.subr.mxu0 0.0
    %151 = vmatpush1.msra.mxu0 0.0
    %152 = vmatprep.subr.mxu0 0.0
    %153 = vmatpush1.msra.mxu0 0.0
    %154 = vmatprep.mubr.f32.mxu0 0.0
    %155 = vmatmul.mubr.f32.gmra.mrb[0].mxu0 %v88
    %v156 = vpop.f32.mrb[0].mxu0
    %v157 = vadd.f32 %v84, %v156
    %v158 = vpop.f32.mrb[0].mxu0
    %159 = vdwg.mxu0
    %v160 = vrot.slane %v157, 4
    %v161 = vadd.f32 %v157, %v160
    %v162 = vrot.slane %v161, 2
    %v163 = vadd.f32 %v161, %v162
    %v164 = vrot.slane %v163, 1
    %v165 = vadd.f32 %v163, %v164
    %v166 = vrcp.pop 8.0
    %v167 = vmul.f32 %v165, %v166
    %v168 = vsub.f32 %v157, %v167
    %v169 = vmul.f32 %v168, %v168
    %v170 = vrot.slane %v169, 4
    %v171 = vadd.f32 %v169, %v170
    %v172 = vrot.slane %v171, 2
    %v173 = vadd.f32 %v171, %v172
    %v174 = vrot.slane %v173, 1
    %v175 = vadd.f32 %v173, %v174
    %v176 = vmul.f32 %v175, %v166
    %v177 = vadd.f32 %v176, 1e-05
    %v178 = vrsqrt.pop %v177
    %v179 = vmul.f32 %v168, %v178
    %v180 = vmax.f32 %v179, 0.0
    %v181 = vld [vmem:[#allocation6] sm:$0xff]
    %v182 = vld [vmem:[#allocation6 + $0x8] sm:$0xff]
    %v183 = vld [vmem:[#allocation6 + $0x10] sm:$0xff]
    %v184 = vld [vmem:[#allocation6 + $0x18] sm:$0xff]
    %v185 = vld [vmem:[%s4] sm:$0x1]
    %v187 = vlaneseq
    %v188 = vshrl.u32 %v187, 7
    %v189 = vsub.s32 0, %v188
    %v190 = vrot.slane %v185, %v189
    %vm192 = vcmask 261120
    %v194 = vsel %vm192, %v180, 0
    %196 = vmatprep.subr.mxu0 0.0
    %197 = vmatpush1.msra.mxu0 %v181
    %198 = vmatprep.subr.mxu0 0.0
    %199 = vmatpush1.msra.mxu0 %v182
    %200 = vmatprep.subr.mxu0 0.0
    %201 = vmatpush1.msra.mxu0 %v183
    %202 = vmatprep.subr.mxu0 0.0
    %203 = vmatpush1.msra.mxu0 %v184
    %204 = vmatprep.subr.mxu0 0.0
    %205 = vmatpush1.msra.mxu0 0.0
    %206 = vmatprep.subr.mxu0 0.0
    %207 = vmatpush1.msra.mxu0 0.0
    %208 = vmatprep.subr.mxu0 0.0
    %209 = vmatpush1.msra.mxu0 0.0
    %210 = vmatprep.subr.mxu0 0.0
    %211 = vmatpush1.msra.mxu0 0.0
    %212 = vmatprep.subr.mxu0 0.0
    %213 = vmatpush1.msra.mxu0 0.0
    %214 = vmatprep.subr.mxu0 0.0
    %215 = vmatpush1.msra.mxu0 0.0
    %216 = vmatprep.subr.mxu0 0.0
    %217 = vmatpush1.msra.mxu0 0.0
    %218 = vmatprep.subr.mxu0 0.0
    %219 = vmatpush1.msra.mxu0 0.0
    %220 = vmatprep.subr.mxu0 0.0
    %221 = vmatpush1.msra.mxu0 0.0
    %222 = vmatprep.subr.mxu0 0.0
    %223 = vmatpush1.msra.mxu0 0.0
    %224 = vmatprep.subr.mxu0 0.0
    %225 = vmatpush1.msra.mxu0 0.0
    %226 = vmatprep.subr.mxu0 0.0
    %227 = vmatpush1.msra.mxu0 0.0
    %228 = vmatprep.subr.mxu0 0.0
    %229 = vmatpush1.msra.mxu0 0.0
    %230 = vmatprep.subr.mxu0 0.0
    %231 = vmatpush1.msra.mxu0 0.0
    %232 = vmatprep.subr.mxu0 0.0
    %233 = vmatpush1.msra.mxu0 0.0
    %234 = vmatprep.subr.mxu0 0.0
    %235 = vmatpush1.msra.mxu0 0.0
    %236 = vmatprep.subr.mxu0 0.0
    %237 = vmatpush1.msra.mxu0 0.0
    %238 = vmatprep.subr.mxu0 0.0
    %239 = vmatpush1.msra.mxu0 0.0
    %240 = vmatprep.subr.mxu0 0.0
    %241 = vmatpush1.msra.mxu0 0.0
    %242 = vmatprep.subr.mxu0 0.0
    %243 = vmatpush1.msra.mxu0 0.0
    %244 = vmatprep.subr.mxu0 0.0
    %245 = vmatpush1.msra.mxu0 0.0
    %246 = vmatprep.subr.mxu0 0.0
    %247 = vmatpush1.msra.mxu0 0.0
    %248 = vmatprep.subr.mxu0 0.0
    %249 = vmatpush1.msra.mxu0 0.0
    %250 = vmatprep.subr.mxu0 0.0
    %251 = vmatpush1.msra.mxu0 0.0
    %252 = vmatprep.subr.mxu0 0.0
    %253 = vmatpush1.msra.mxu0 0.0
    %254 = vmatprep.subr.mxu0 0.0
    %255 = vmatpush1.msra.mxu0 0.0
    %256 = vmatprep.subr.mxu0 0.0
    %257 = vmatpush1.msra.mxu0 0.0
    %258 = vmatprep.subr.mxu0 0.0
    %259 = vmatpush1.msra.mxu0 0.0
    %260 = vmatprep.mubr.f32.mxu0 0.0
    %261 = vmatmul.mubr.f32.gmra.mrb[0].mxu0 %v194
    %v262 = vpop.f32.mrb[0].mxu0
    %v263 = vadd.f32 %v190, %v262
    %v264 = vpop.f32.mrb[0].mxu0
    %265 = vdwg.mxu0
    %v266 = vrot.slane %v263, 4
    %v267 = vadd.f32 %v263, %v266
    %v268 = vrot.slane %v267, 2
    %v269 = vadd.f32 %v267, %v268
    %v270 = vrot.slane %v269, 1
    %v271 = vadd.f32 %v269, %v270
    %v272 = vmul.f32 %v271, %v166
    %v273 = vsub.f32 %v263, %v272
    %v274 = vmul.f32 %v273, %v273
    %v275 = vrot.slane %v274, 4
    %v276 = vadd.f32 %v274, %v275
    %v277 = vrot.slane %v276, 2
    %v278 = vadd.f32 %v276, %v277
    %v279 = vrot.slane %v278, 1
    %v280 = vadd.f32 %v278, %v279
    %v281 = vmul.f32 %v280, %v166
    %v282 = vadd.f32 %v281, 1e-05
    %v283 = vrsqrt.pop %v282
    %v284 = vmul.f32 %v273, %v283
    %v285 = vmax.f32 %v284, 0.0
    %v286 = vld [vmem:[#allocation7] sm:$0xff]
    %v287 = vld [vmem:[#allocation7 + $0x8] sm:$0xff]
    %v288 = vld [vmem:[#allocation7 + $0x10] sm:$0xff]
    %v289 = vld [vmem:[#allocation7 + $0x18] sm:$0xff]
    %v290 = vld [vmem:[%s6] sm:$0x1]
    %v292 = vlaneseq
    %v293 = vshrl.u32 %v292, 7
    %v294 = vsub.s32 0, %v293
    %v295 = vrot.slane %v290, %v294
    %v298 = vsel %vm192, %v285, 0
    %300 = vmatprep.subr.mxu0 0.0
    %301 = vmatpush1.msra.mxu0 %v286
    %302 = vmatprep.subr.mxu0 0.0
    %303 = vmatpush1.msra.mxu0 %v287
    %304 = vmatprep.subr.mxu0 0.0
    %305 = vmatpush1.msra.mxu0 %v288
    %306 = vmatprep.subr.mxu0 0.0
    %307 = vmatpush1.msra.mxu0 %v289
    %308 = vmatprep.subr.mxu0 0.0
    %309 = vmatpush1.msra.mxu0 0.0
    %310 = vmatprep.subr.mxu0 0.0
    %311 = vmatpush1.msra.mxu0 0.0
    %312 = vmatprep.subr.mxu0 0.0
    %313 = vmatpush1.msra.mxu0 0.0
    %314 = vmatprep.subr.mxu0 0.0
    %315 = vmatpush1.msra.mxu0 0.0
    %316 = vmatprep.subr.mxu0 0.0
    %317 = vmatpush1.msra.mxu0 0.0
    %318 = vmatprep.subr.mxu0 0.0
    %319 = vmatpush1.msra.mxu0 0.0
    %320 = vmatprep.subr.mxu0 0.0
    %321 = vmatpush1.msra.mxu0 0.0
    %322 = vmatprep.subr.mxu0 0.0
    %323 = vmatpush1.msra.mxu0 0.0
    %324 = vmatprep.subr.mxu0 0.0
    %325 = vmatpush1.msra.mxu0 0.0
    %326 = vmatprep.subr.mxu0 0.0
    %327 = vmatpush1.msra.mxu0 0.0
    %328 = vmatprep.subr.mxu0 0.0
    %329 = vmatpush1.msra.mxu0 0.0
    %330 = vmatprep.subr.mxu0 0.0
    %331 = vmatpush1.msra.mxu0 0.0
    %332 = vmatprep.subr.mxu0 0.0
    %333 = vmatpush1.msra.mxu0 0.0
    %334 = vmatprep.subr.mxu0 0.0
    %335 = vmatpush1.msra.mxu0 0.0
    %336 = vmatprep.subr.mxu0 0.0
    %337 = vmatpush1.msra.mxu0 0.0
    %338 = vmatprep.subr.mxu0 0.0
    %339 = vmatpush1.msra.mxu0 0.0
    %340 = vmatprep.subr.mxu0 0.0
    %341 = vmatpush1.msra.mxu0 0.0
    %342 = vmatprep.subr.mxu0 0.0
    %343 = vmatpush1.msra.mxu0 0.0
    %344 = vmatprep.subr.mxu0 0.0
    %345 = vmatpush1.msra.mxu0 0.0
    %346 = vmatprep.subr.mxu0 0.0
    %347 = vmatpush1.msra.mxu0 0.0
    %348 = vmatprep.subr.mxu0 0.0
    %349 = vmatpush1.msra.mxu0 0.0
    %350 = vmatprep.subr.mxu0 0.0
    %351 = vmatpush1.msra.mxu0 0.0
    %352 = vmatprep.subr.mxu0 0.0
    %353 = vmatpush1.msra.mxu0 0.0
    %354 = vmatprep.subr.mxu0 0.0
    %355 = vmatpush1.msra.mxu0 0.0
    %356 = vmatprep.subr.mxu0 0.0
    %357 = vmatpush1.msra.mxu0 0.0
    %358 = vmatprep.subr.mxu0 0.0
    %359 = vmatpush1.msra.mxu0 0.0
    %360 = vmatprep.subr.mxu0 0.0
    %361 = vmatpush1.msra.mxu0 0.0
    %362 = vmatprep.subr.mxu0 0.0
    %363 = vmatpush1.msra.mxu0 0.0
    %364 = vmatprep.mubr.f32.mxu0 0.0
    %365 = vmatmul.mubr.f32.gmra.mrb[0].mxu0 %v298
    %v366 = vpop.f32.mrb[0].mxu0
    %v367 = vadd.f32 %v295, %v366
    %v368 = vpop.f32.mrb[0].mxu0
    %369 = vdwg.mxu0
    %v370 = vsub.f32 0.0, %v367
    %v371 = vmul.f32 %v370, 1.442695
    %v372 = vpow.pop %v371
    %v373 = vadd.f32 %v372, 1.0
    %v374 = vrcp.pop %v373
    %vm375 = vcmask 31744
    %376 = vst.msk [vmem:[%s7] sm:$0xff] %vm375, %v374
    // Predicated region
    $region46: #{mlp_forward.1} parent=1 // pred_check
      _
    $region47: #{mlp_forward.1} parent=1 // pred_check_branch
      %378 = sbr.rel (0) target = $region49
    $region48: #{mlp_forward.1} parent=1 // pred_region
      _
    $region49: #{mlp_forward.1} parent=1 // pred_fallthru
      _
    // Predicated region
    $region50: #{mlp_forward.1} parent=1 // pred_check
      _
    $region51: #{mlp_forward.1} parent=1 // pred_check_branch
      %380 = sbr.rel (0) target = $region53
    $region52: #{mlp_forward.1} parent=1 // pred_region
      _
    $region53: #{mlp_forward.1} parent=1 // pred_fallthru
      _
    %381 = vsyncpa [#allocation3], 1
    %382 = vsyncpa [#allocation5], 1
    %383 = vsyncpa [#allocation8], 1

</llo_original>
